<compile_context>
chip_gen: v7x
topology: tpu7x:2x2x1
jax: 0.10.0
libtpu: 0.0.40
codegen_flags: <defaults>
</compile_context>

<pallas_src>
import functools

import jax
import jax.numpy as jnp
from jax.experimental import pallas as pl
from jax.experimental.pallas import tpu as pltpu


def _round_up(x, m):
    return ((x + m - 1) // m) * m


def _vmem_capacity_bytes():
    """Per-core VMEM capacity; conservative fallback if the query fails."""
    try:
        info = pltpu.get_tpu_info()
        cap = getattr(info, "vmem_capacity_bytes", None)
        if cap:
            return int(cap)
    except Exception:
        pass
    return 64 * 1024 * 1024  # v7x per-TensorCore VMEM (smallest of the three gens)


def _pick_batch_tile(batch, tgt_p, src_p, dim_p, itemsize, budget):
    """Largest legal batch tile whose per-step working set fits the VMEM budget."""
    sub = 8 if itemsize >= 4 else 16  # sublane tile for the operand dtype

    # Fixed blocks (single-buffered): three dim_p x dim_p weights + bias.
    fixed = (3 * dim_p * dim_p + dim_p) * itemsize
    # Per batch item per grid step: double-buffered input / context / context^T /
    # both output blocks, plus the f32 intermediates (h_t, scores/e/align, c, out)
    # that live in VMEM scratch.
    per_item = 2 * itemsize * (2 * tgt_p * dim_p + 2 * src_p * dim_p + tgt_p * src_p)
    per_item += 4 * 3 * (tgt_p * dim_p + tgt_p * src_p)

    b_vmem = max(1, (budget - fixed) // max(per_item, 1))

    if batch <= sub:
        # Tiny batch: one tile spanning the whole batch keeps the output block
        # (8,128)-legal (block second-minor dim == full array dim).
        return batch

    # Keep >= 2 grid steps so both v7x TensorCores get work (free on v5e/v6e).
    b_vmem = min(b_vmem, max(sub, -(-batch // 2)))

    if b_vmem < sub:
        return sub  # legality floor; the 55% budget leaves slack for this

    b_tile = (min(b_vmem, batch) // sub) * sub
    # Prefer an MXU-M-friendly tile: (b_tile * tgt_p) a multiple of 256
    # (v6e/v7x systolic M; 128 suffices on v5e) without giving up > half.
    for cand in range(b_tile, sub - 1, -sub):
        if (cand * tgt_p) % 256 == 0:
            if 2 * cand >= b_tile:
                b_tile = cand
            break
    return max(b_tile, sub)


def _global_attention_kernel(inp_ref, ctx_ref, ctx_t_ref, w_in_t_ref,
                             w_out_c_t_ref, w_out_i_t_ref, b_out_ref,
                             attn_ref, align_ref, *, src_len):
    bt, tgt, dim_p = inp_ref.shape
    src_p = ctx_ref.shape[1]

    x = inp_ref[...]                           # (bt, tgt, dim_p), native dtype
    x2 = x.reshape(bt * tgt, dim_p)            # relayout-free (tgt % sublane == 0)

    # ---- linear_in, folded over (bt*tgt) so the MXU M-dim is large ----------
    h_t = jnp.dot(x2, w_in_t_ref[...], preferred_element_type=jnp.float32)

    # ---- linear_out's input-half while x2 is hot (shortens live ranges) -----
    out_i = jnp.dot(x2, w_out_i_t_ref[...], preferred_element_type=jnp.float32)

    h_t = h_t.reshape(bt, tgt, dim_p).astype(ctx_ref.dtype)

    # ---- attention scores against pre-transposed context (no XLU transpose) -
    scores = jnp.einsum('btd,bds->bts', h_t, ctx_t_ref[...],
                        preferred_element_type=jnp.float32)
    if src_p != src_len:                       # static: mask padded source cols
        col = jax.lax.broadcasted_iota(jnp.int32, scores.shape, 2)
        scores = jnp.where(col < src_len, scores, -1e30)

    # ---- softmax over src_len ------------------------------------------------
    m = jnp.max(scores, axis=-1, keepdims=True)
    e = jnp.exp(scores - m)
    denom = jnp.sum(e, axis=-1, keepdims=True)
    align = e * pl.reciprocal(denom, approx=False)   # exact: keeps 1e-5 numerics

    # ---- context read-out: per-batch bmm -> (bt, tgt, dim_p) -----------------
    c = jnp.einsum('bts,bsd->btd', align.astype(ctx_ref.dtype), ctx_ref[...],
                   preferred_element_type=jnp.float32)

    # ---- linear_out(cat([c, x])) folded over (bt*tgt) ------------------------
    out = (jnp.dot(c.reshape(bt * tgt, dim_p).astype(x.dtype), w_out_c_t_ref[...],
                   preferred_element_type=jnp.float32)
           + out_i + b_out_ref[...].astype(jnp.float32))

    # Emit directly in (tgt, batch, ...) layout: leading-axes swap only, lane
    # dim unchanged, so no minor-axis transpose and no post-kernel HBM pass.
    attn = jnp.tanh(out).reshape(bt, tgt, dim_p)
    attn_ref[...] = jnp.transpose(attn, (1, 0, 2)).astype(attn_ref.dtype)
    align_ref[...] = jnp.transpose(align, (1, 0, 2)).astype(align_ref.dtype)


def global_attention(inputs, context, context_lengths, w_in, w_out, b_out):
    """Pallas implementation of GlobalAttention.forward.

    inputs : (batch, tgt_len, dim)
    context: (batch, src_len, dim)
    context_lengths: accepted for API parity; the reference forward() never reads it
    w_in   : (dim, dim)      -- nn.Linear(dim, dim, bias=False).weight
    w_out  : (dim, 2*dim)    -- nn.Linear(2*dim, dim).weight
    b_out  : (dim,)          -- nn.Linear(2*dim, dim).bias
    """
    # TODO(synk): full OpenNMT GlobalAttention masks scores with memory_lengths;
    # the supplied PyTorch forward() ignores context_lengths, so we do too.
    del context_lengths
    batch, tgt_len, dim = inputs.shape
    _, src_len, _ = context.shape
    out_dtype = inputs.dtype
    itemsize = jnp.dtype(out_dtype).itemsize
    sub = 8 if itemsize >= 4 else 16

    dim_p = _round_up(dim, 128)       # lane-dense feature dim
    src_p = _round_up(src_len, 128)   # lane-dense source dim
    tgt_p = _round_up(tgt_len, sub)   # sublane-aligned target dim (free reshape)

    vmem_cap = _vmem_capacity_bytes()
    budget = int(vmem_cap * 0.55)
    b_tile = _pick_batch_tile(batch, tgt_p, src_p, dim_p, itemsize, budget)
    batch_p = _round_up(batch, b_tile)

    # Zero-pad so every in-kernel access is a full (8,128) tile and the grid
    # divides the batch exactly (no b_tile collapse for awkward batch sizes).
    inp_p = jnp.pad(inputs, ((0, batch_p - batch), (0, tgt_p - tgt_len),
                             (0, dim_p - dim)))
    ctx_p = jnp.pad(context, ((0, batch_p - batch), (0, src_p - src_len),
                              (0, dim_p - dim)))
    ctx_t = jnp.transpose(ctx_p, (0, 2, 1))     # (batch_p, dim_p, src_p)

    w_in = jnp.asarray(w_in)
    w_out = jnp.asarray(w_out)
    b_out = jnp.asarray(b_out)
    pad2 = ((0, dim_p - dim), (0, dim_p - dim))
    w_in_t = jnp.pad(w_in.T, pad2)                 # linear_in weight (transposed)
    w_out_c_t = jnp.pad(w_out[:, :dim].T, pad2)    # linear_out half acting on c
    w_out_i_t = jnp.pad(w_out[:, dim:].T, pad2)    # linear_out half acting on inputs
    b_p = jnp.pad(b_out.reshape(1, dim), ((0, 0), (0, dim_p - dim)))

    kernel = functools.partial(_global_attention_kernel, src_len=src_len)
    single = pl.Buffered(1)   # weights/bias are grid-invariant: single-buffer them

    attn_p, align_p = pl.pallas_call(
        kernel,
        out_shape=(
            jax.ShapeDtypeStruct((tgt_p, batch_p, dim_p), out_dtype),
            jax.ShapeDtypeStruct((tgt_p, batch_p, src_p), out_dtype),
        ),
        grid_spec=pltpu.PrefetchScalarGridSpec(
            num_scalar_prefetch=0,
            grid=(batch_p // b_tile,),
            in_specs=[
                pl.BlockSpec((b_tile, tgt_p, dim_p), lambda i: (i, 0, 0)),  # inputs
                pl.BlockSpec((b_tile, src_p, dim_p), lambda i: (i, 0, 0)),  # context
                pl.BlockSpec((b_tile, dim_p, src_p), lambda i: (i, 0, 0)),  # context^T
                pl.BlockSpec((dim_p, dim_p), lambda i: (0, 0),
                             pipeline_mode=single),                         # W_in^T
                pl.BlockSpec((dim_p, dim_p), lambda i: (0, 0),
                             pipeline_mode=single),                         # W_out_c^T
                pl.BlockSpec((dim_p, dim_p), lambda i: (0, 0),
                             pipeline_mode=single),                         # W_out_i^T
                pl.BlockSpec((1, dim_p), lambda i: (0, 0),
                             pipeline_mode=single),                         # bias
            ],
            out_specs=[
                pl.BlockSpec((tgt_p, b_tile, dim_p), lambda i: (0, i, 0)),
                pl.BlockSpec((tgt_p, b_tile, src_p), lambda i: (0, i, 0)),
            ],
        ),
        compiler_params=pltpu.CompilerParams(
            dimension_semantics=("parallel",),
            vmem_limit_bytes=int(vmem_cap * 0.8)),
    )(inp_p, ctx_p, ctx_t, w_in_t, w_out_c_t, w_out_i_t, b_p)

    # Outputs are already in (tgt, batch, ...) layout; just strip the padding.
    attn_h = attn_p[:tgt_len, :batch, :dim]
    align = align_p[:tgt_len, :batch, :src_len]
    return attn_h, align


def _reference(inputs, context, w_in, w_out, b_out):
    """Pure-JAX reference mirroring the PyTorch forward exactly."""
    h_t = jnp.einsum('btd,ed->bte', inputs, w_in)             # linear_in
    align = jnp.einsum('bte,bse->bts', h_t, context)           # bmm with context^T
    align = jax.nn.softmax(align, axis=-1)
    c = jnp.einsum('bts,bsd->btd', align, context)
    concat = jnp.concatenate([c, inputs], axis=2)
    attn_h = jnp.tanh(jnp.einsum('btk,dk->btd', concat, w_out) + b_out)
    return jnp.transpose(attn_h, (1, 0, 2)), jnp.transpose(align, (1, 0, 2))


if __name__ == "__main__":
    batch, tgt_len, src_len, dim = 2, 8, 16, 32

    key = jax.random.PRNGKey(0)
    k_inp, k_ctx, k_win, k_wout, k_bout = jax.random.split(key, 5)

    inputs = jax.random.normal(k_inp, (batch, tgt_len, dim), dtype=jnp.float32)
    context = jax.random.normal(k_ctx, (batch, src_len, dim), dtype=jnp.float32)
    context_lengths = jnp.full((batch,), src_len, dtype=jnp.int32)  # unused by forward

    # Deterministic parameter init (PyTorch default: U(-1/sqrt(fan_in), 1/sqrt(fan_in)))
    bound_in = 1.0 / (dim ** 0.5)
    bound_out = 1.0 / ((2 * dim) ** 0.5)
    w_in = jax.random.uniform(k_win, (dim, dim), jnp.float32, -bound_in, bound_in)
    w_out = jax.random.uniform(k_wout, (dim, 2 * dim), jnp.float32, -bound_out, bound_out)
    b_out = jax.random.uniform(k_bout, (dim,), jnp.float32, -bound_out, bound_out)

    attn_h, align_vectors = global_attention(inputs, context, context_lengths,
                                             w_in, w_out, b_out)
    jax.block_until_ready((attn_h, align_vectors))

    ref_attn, ref_align = _reference(inputs, context, w_in, w_out, b_out)
    assert attn_h.shape == (tgt_len, batch, dim)
    assert align_vectors.shape == (tgt_len, batch, src_len)
    assert jnp.allclose(attn_h, ref_attn, atol=1e-5, rtol=1e-5)
    assert jnp.allclose(align_vectors, ref_align, atol=1e-5, rtol=1e-5)

    print("KERNEL_OK")
</pallas_src>

<mosaic_0001>
module attributes {stable_mosaic.version = 11 : i64} {
  func.func @_global_attention_kernel(%arg0: i32, %arg1: memref<2x8x128xf32, #tpu.memory_space<vmem>>, %arg2: memref<2x128x128xf32, #tpu.memory_space<vmem>>, %arg3: memref<2x128x128xf32, #tpu.memory_space<vmem>>, %arg4: memref<128x128xf32, #tpu.memory_space<vmem>>, %arg5: memref<128x128xf32, #tpu.memory_space<vmem>>, %arg6: memref<128x128xf32, #tpu.memory_space<vmem>>, %arg7: memref<1x128xf32, #tpu.memory_space<vmem>>, %arg8: memref<8x2x128xf32, #tpu.memory_space<vmem>>, %arg9: memref<8x2x128xf32, #tpu.memory_space<vmem>>) attributes {dimension_semantics = [#tpu.dimension_semantics<parallel>], iteration_bounds = array<i64: 1>, scalar_prefetch = 0 : i64, scratch_operands = 0 : i64, tpu.core_type = #tpu.core_type<tc>, window_params = [{transform_indices = @transform_0, window_bounds = array<i64: 2, 8, 128>}, {transform_indices = @transform_1, window_bounds = array<i64: 2, 128, 128>}, {transform_indices = @transform_2, window_bounds = array<i64: 2, 128, 128>}, {pipeline_mode = #tpu.pipeline_mode<synchronous>, transform_indices = @transform_3, window_bounds = array<i64: 128, 128>}, {pipeline_mode = #tpu.pipeline_mode<synchronous>, transform_indices = @transform_4, window_bounds = array<i64: 128, 128>}, {pipeline_mode = #tpu.pipeline_mode<synchronous>, transform_indices = @transform_5, window_bounds = array<i64: 128, 128>}, {pipeline_mode = #tpu.pipeline_mode<synchronous>, transform_indices = @transform_6, window_bounds = array<i64: 1, 128>}, {transform_indices = @transform_7, window_bounds = array<i64: 8, 2, 128>}, {transform_indices = @transform_8, window_bounds = array<i64: 8, 2, 128>}]} {
    %c0 = arith.constant 0 : index
    %c0_0 = arith.constant 0 : index
    %c0_1 = arith.constant 0 : index
    %0 = vector.load %arg1[%c0, %c0_0, %c0_1] : memref<2x8x128xf32, #tpu.memory_space<vmem>>, vector<2x8x128xf32>
    %1 = vector.shape_cast %0 : vector<2x8x128xf32> to vector<16x128xf32>
    %c0_2 = arith.constant 0 : index
    %c0_3 = arith.constant 0 : index
    %2 = vector.load %arg4[%c0_2, %c0_3] : memref<128x128xf32, #tpu.memory_space<vmem>>, vector<128x128xf32>
    %cst = arith.constant dense<0.000000e+00> : vector<16x128xf32>
    %3 = tpu.matmul %1, %2, %cst {dimension_numbers = #tpu.dot_dimension_numbers<[1], [0], [0], [1], [0, 0, 1, 1], [], []>} : vector<16x128xf32>, vector<128x128xf32>, vector<16x128xf32> -> vector<16x128xf32>
    %c0_4 = arith.constant 0 : index
    %c0_5 = arith.constant 0 : index
    %4 = vector.load %arg6[%c0_4, %c0_5] : memref<128x128xf32, #tpu.memory_space<vmem>>, vector<128x128xf32>
    %cst_6 = arith.constant dense<0.000000e+00> : vector<16x128xf32>
    %5 = tpu.matmul %1, %4, %cst_6 {dimension_numbers = #tpu.dot_dimension_numbers<[1], [0], [0], [1], [0, 0, 1, 1], [], []>} : vector<16x128xf32>, vector<128x128xf32>, vector<16x128xf32> -> vector<16x128xf32>
    %6 = vector.shape_cast %3 : vector<16x128xf32> to vector<2x8x128xf32>
    %c0_7 = arith.constant 0 : index
    %c0_8 = arith.constant 0 : index
    %c0_9 = arith.constant 0 : index
    %7 = vector.load %arg3[%c0_7, %c0_8, %c0_9] : memref<2x128x128xf32, #tpu.memory_space<vmem>>, vector<2x128x128xf32>
    "tpu.trace_start"() <{level = 10 : i32, message = "btd,bds->bts"}> : () -> ()
    %cst_10 = arith.constant dense<0.000000e+00> : vector<2x8x128xf32>
    %8 = tpu.matmul %6, %7, %cst_10 {dimension_numbers = #tpu.dot_dimension_numbers<[2], [1], [1], [2], [0, 0, 0, 1, 1, 2], [0], [0]>} : vector<2x8x128xf32>, vector<2x128x128xf32>, vector<2x8x128xf32> -> vector<2x8x128xf32>
    "tpu.trace_stop"() : () -> ()
    %9 = tpu.iota {dimensions = array<i32: 2>} : vector<2x8x128xi32>
    %c16_i32 = arith.constant 16 : i32
    %10 = vector.broadcast %c16_i32 : i32 to vector<2x8x128xi32>
    %11 = arith.cmpi slt, %9, %10 : vector<2x8x128xi32>
    %cst_11 = arith.constant -1.000000e+30 : f32
    %12 = vector.broadcast %cst_11 : f32 to vector<2x8x128xf32>
    %13 = arith.select %11, %8, %12 : vector<2x8x128xi1>, vector<2x8x128xf32>
    %cst_12 = arith.constant dense<0xFF800000> : vector<2x8xf32>
    %14 = vector.multi_reduction <maximumf>, %13, %cst_12 [2] : vector<2x8x128xf32> to vector<2x8xf32>
    %15 = vector.shape_cast %14 : vector<2x8xf32> to vector<2x8x1xf32>
    %16 = vector.broadcast %15 : vector<2x8x1xf32> to vector<2x8x128xf32>
    %17 = arith.subf %13, %16 : vector<2x8x128xf32>
    %18 = math.exp %17 : vector<2x8x128xf32>
    %cst_13 = arith.constant dense<0.000000e+00> : vector<2x8xf32>
    %19 = vector.multi_reduction <add>, %18, %cst_13 [2] : vector<2x8x128xf32> to vector<2x8xf32>
    %20 = vector.shape_cast %19 : vector<2x8xf32> to vector<2x8x1xf32>
    %21 = tpu.reciprocal %20 : vector<2x8x1xf32> -> vector<2x8x1xf32>
    %22 = vector.broadcast %21 : vector<2x8x1xf32> to vector<2x8x128xf32>
    %23 = arith.mulf %18, %22 : vector<2x8x128xf32>
    %c0_14 = arith.constant 0 : index
    %c0_15 = arith.constant 0 : index
    %c0_16 = arith.constant 0 : index
    %24 = vector.load %arg2[%c0_14, %c0_15, %c0_16] : memref<2x128x128xf32, #tpu.memory_space<vmem>>, vector<2x128x128xf32>
    "tpu.trace_start"() <{level = 10 : i32, message = "bts,bsd->btd"}> : () -> ()
    %cst_17 = arith.constant dense<0.000000e+00> : vector<2x8x128xf32>
    %25 = tpu.matmul %23, %24, %cst_17 {dimension_numbers = #tpu.dot_dimension_numbers<[2], [1], [1], [2], [0, 0, 0, 1, 1, 2], [0], [0]>} : vector<2x8x128xf32>, vector<2x128x128xf32>, vector<2x8x128xf32> -> vector<2x8x128xf32>
    "tpu.trace_stop"() : () -> ()
    %26 = vector.shape_cast %25 : vector<2x8x128xf32> to vector<16x128xf32>
    %c0_18 = arith.constant 0 : index
    %c0_19 = arith.constant 0 : index
    %27 = vector.load %arg5[%c0_18, %c0_19] : memref<128x128xf32, #tpu.memory_space<vmem>>, vector<128x128xf32>
    %cst_20 = arith.constant dense<0.000000e+00> : vector<16x128xf32>
    %28 = tpu.matmul %26, %27, %cst_20 {dimension_numbers = #tpu.dot_dimension_numbers<[1], [0], [0], [1], [0, 0, 1, 1], [], []>} : vector<16x128xf32>, vector<128x128xf32>, vector<16x128xf32> -> vector<16x128xf32>
    %29 = arith.addf %28, %5 : vector<16x128xf32>
    %c0_21 = arith.constant 0 : index
    %c0_22 = arith.constant 0 : index
    %30 = vector.load %arg7[%c0_21, %c0_22] : memref<1x128xf32, #tpu.memory_space<vmem>>, vector<1x128xf32>
    %31 = vector.broadcast %30 : vector<1x128xf32> to vector<16x128xf32>
    %32 = arith.addf %29, %31 : vector<16x128xf32>
    %33 = math.tanh %32 : vector<16x128xf32>
    %34 = vector.shape_cast %33 : vector<16x128xf32> to vector<2x8x128xf32>
    %35 = tpu.transpose %34, [1, 0, 2] : vector<2x8x128xf32> -> vector<8x2x128xf32>
    %c0_23 = arith.constant 0 : index
    %c0_24 = arith.constant 0 : index
    %c0_25 = arith.constant 0 : index
    %36 = vector.load %arg8[%c0_23, %c0_24, %c0_25] : memref<8x2x128xf32, #tpu.memory_space<vmem>>, vector<8x2x128xf32>
    tpu.vector_store %arg8[%c0_23, %c0_24, %c0_25], %35 {strides = array<i32>} : memref<8x2x128xf32, #tpu.memory_space<vmem>>, vector<8x2x128xf32>,
    %37 = tpu.transpose %23, [1, 0, 2] : vector<2x8x128xf32> -> vector<8x2x128xf32>
    %c0_26 = arith.constant 0 : index
    %c0_27 = arith.constant 0 : index
    %c0_28 = arith.constant 0 : index
    %38 = vector.load %arg9[%c0_26, %c0_27, %c0_28] : memref<8x2x128xf32, #tpu.memory_space<vmem>>, vector<8x2x128xf32>
    tpu.vector_store %arg9[%c0_26, %c0_27, %c0_28], %37 {strides = array<i32>} : memref<8x2x128xf32, #tpu.memory_space<vmem>>, vector<8x2x128xf32>,
    return
  }
  func.func @transform_0(%arg0: i32) -> (i32, i32, i32) {
    %c0_i32 = arith.constant 0 : i32
    %c0_i32_0 = arith.constant 0 : i32
    %c0_i32_1 = arith.constant 0 : i32
    return %arg0, %c0_i32, %c0_i32_0 : i32, i32, i32
  }
  func.func @transform_1(%arg0: i32) -> (i32, i32, i32) {
    %c0_i32 = arith.constant 0 : i32
    %c0_i32_0 = arith.constant 0 : i32
    %c0_i32_1 = arith.constant 0 : i32
    return %arg0, %c0_i32, %c0_i32_0 : i32, i32, i32
  }
  func.func @transform_2(%arg0: i32) -> (i32, i32, i32) {
    %c0_i32 = arith.constant 0 : i32
    %c0_i32_0 = arith.constant 0 : i32
    %c0_i32_1 = arith.constant 0 : i32
    return %arg0, %c0_i32, %c0_i32_0 : i32, i32, i32
  }
  func.func @transform_3(%arg0: i32) -> (i32, i32) {
    %c0_i32 = arith.constant 0 : i32
    %c0_i32_0 = arith.constant 0 : i32
    %c0_i32_1 = arith.constant 0 : i32
    return %c0_i32, %c0_i32_0 : i32, i32
  }
  func.func @transform_4(%arg0: i32) -> (i32, i32) {
    %c0_i32 = arith.constant 0 : i32
    %c0_i32_0 = arith.constant 0 : i32
    %c0_i32_1 = arith.constant 0 : i32
    return %c0_i32, %c0_i32_0 : i32, i32
  }
  func.func @transform_5(%arg0: i32) -> (i32, i32) {
    %c0_i32 = arith.constant 0 : i32
    %c0_i32_0 = arith.constant 0 : i32
    %c0_i32_1 = arith.constant 0 : i32
    return %c0_i32, %c0_i32_0 : i32, i32
  }
  func.func @transform_6(%arg0: i32) -> (i32, i32) {
    %c0_i32 = arith.constant 0 : i32
    %c0_i32_0 = arith.constant 0 : i32
    %c0_i32_1 = arith.constant 0 : i32
    return %c0_i32, %c0_i32_0 : i32, i32
  }
  func.func @transform_7(%arg0: i32) -> (i32, i32, i32) {
    %c0_i32 = arith.constant 0 : i32
    %c0_i32_0 = arith.constant 0 : i32
    %c0_i32_1 = arith.constant 0 : i32
    return %c0_i32, %arg0, %c0_i32_0 : i32, i32, i32
  }
  func.func @transform_8(%arg0: i32) -> (i32, i32, i32) {
    %c0_i32 = arith.constant 0 : i32
    %c0_i32_0 = arith.constant 0 : i32
    %c0_i32_1 = arith.constant 0 : i32
    return %c0_i32, %arg0, %c0_i32_0 : i32, i32, i32
  }
}

</mosaic_0001>

<llo_original>
// kernel: tpu_custom_call.1
$region0: #{tpu_custom_call.1}
  #allocation0 [shape = 'u32[]', space=smem, size = 0x4, offset = 0x4, fixed_abs, tag = 'smem constant byte address 0x4 - core index']
  #allocation1 [shape = 'u32[144,128]{1,0:T(1,128)}', space=vmem, size = 0x12000, scoped, tag = 'internal scratch']
  %s0 = inlined_call_operand.hbm [shape: f32[2,8,128], index: 0, kind: input, shape index: {}]
  %s1 = inlined_call_operand.hbm [shape: f32[2,128,128], index: 1, kind: input, shape index: {}]
  %s2 = inlined_call_operand.hbm [shape: f32[2,128,128], index: 2, kind: input, shape index: {}]
  %s3 = inlined_call_operand.hbm [shape: f32[128,128], index: 3, kind: input, shape index: {}]
  %s4 = inlined_call_operand.hbm [shape: f32[128,128], index: 4, kind: input, shape index: {}]
  %s5 = inlined_call_operand.hbm [shape: f32[128,128], index: 5, kind: input, shape index: {}]
  %s6 = inlined_call_operand.vmem [shape: f32[1,128], index: 6, kind: input, shape index: {}]
  %s7 = inlined_call_operand.hbm [shape: f32[8,2,128], index: 7, kind: output, shape index: {0}]
  %s8 = inlined_call_operand.hbm [shape: f32[8,2,128], index: 8, kind: output, shape index: {1}]
  %9 = xla_tuple %s7, %s8
  %s10 = sld [smem:[#allocation0]]
  $region70: #{tpu_custom_call.1} parent=0
    _
  %s12 = ssub.s32 1, %s10
  %s13 = scalar_select 0, %s12, %s10
  $region1: #{tpu_custom_call.1} parent=0
    #allocation2 [shape = 'u8[8192]{0}', space=vmem, size = 0x2000, scoped, tag = 'input window, operand 0, single buffered']
    #allocation3 [shape = 's32[1]{0}', space=sflag, size = 0x4, scoped, tag = 'scoped memory for tpu_custom_call.1']
    #allocation4 [shape = 's32[1]{0}', space=sflag, size = 0x4, scoped, tag = 'scoped memory for tpu_custom_call.1']
    #allocation5 [shape = 'u8[131072]{0}', space=vmem, size = 0x20000, scoped, tag = 'input window, operand 1, single buffered']
    #allocation6 [shape = 's32[1]{0}', space=sflag, size = 0x4, scoped, tag = 'scoped memory for tpu_custom_call.1']
    #allocation7 [shape = 'u8[131072]{0}', space=vmem, size = 0x20000, scoped, tag = 'input window, operand 2, single buffered']
    #allocation8 [shape = 'u8[65536]{0}', space=vmem, size = 0x10000, scoped, tag = 'input window, operand 3, single buffered']
    #allocation9 [shape = 's32[1]{0}', space=sflag, size = 0x4, scoped, tag = 'scoped memory for tpu_custom_call.1']
    #allocation10 [shape = 'u8[65536]{0}', space=vmem, size = 0x10000, scoped, tag = 'input window, operand 4, single buffered']
    #allocation11 [shape = 'u8[65536]{0}', space=vmem, size = 0x10000, scoped, tag = 'input window, operand 5, single buffered']
    #allocation12 [shape = 's32[1]{0}', space=sflag, size = 0x4, scoped, tag = 'scoped memory for tpu_custom_call.1']
    #allocation13 [shape = 'u8[8192]{0}', space=vmem, size = 0x2000, scoped, tag = 'output window, operand 0, single buffered']
    #allocation14 [shape = 'u8[8192]{0}', space=vmem, size = 0x2000, scoped, tag = 'output window, operand 1, single buffered']
    #allocation15 [shape = 's32[1]{0}', space=sflag, size = 0x4, scoped, tag = 'scoped memory for tpu_custom_call.1']
    %14 = vsyncpa [#allocation3], 0
    %15 = vsyncpa [#allocation6], 0
    %16 = vsyncpa [#allocation9], 0
    %17 = vsyncpa [#allocation12], 0
    %18 = vsyncpa [#allocation4], 0
    %19 = vsyncpa [#allocation15], 0
    // Predicated region
    $region2: #{tpu_custom_call.1} parent=1 // pred_check
      _
    $region3: #{tpu_custom_call.1} parent=1 // pred_check_branch
      %21 = sbr.rel (0) target = $region5
    $region4: #{tpu_custom_call.1} parent=1 // pred_region
      %s23 = ssub.s32 256, 256
      %24 = vsyncadd [#allocation3], %s23
      %s25 = sshll.u32 [#allocation2], 4
      %s26 = int_to_ptr.vmem [resolvable:$true] %s25
      %31 = dma.hbm_to_vmem [thread:$0]  %s0, 256, %s26, [#allocation3], 128, 128, 8
    $region5: #{tpu_custom_call.1} parent=1 // pred_fallthru
      _
    // Predicated region
    $region6: #{tpu_custom_call.1} parent=1 // pred_check
      _
    $region7: #{tpu_custom_call.1} parent=1 // pred_check_branch
      %33 = sbr.rel (0) target = $region9
    $region8: #{tpu_custom_call.1} parent=1 // pred_region
      %s35 = ssub.s32 4096, 4096
      %36 = vsyncadd [#allocation6], %s35
      %s37 = sshll.u32 [#allocation5], 4
      %s38 = int_to_ptr.vmem [resolvable:$true] %s37
      %43 = dma.hbm_to_vmem [thread:$0]  %s1, 4096, %s38, [#allocation6], 128, 128, 8
    $region9: #{tpu_custom_call.1} parent=1 // pred_fallthru
      _
    // Predicated region
    $region10: #{tpu_custom_call.1} parent=1 // pred_check
      _
    $region11: #{tpu_custom_call.1} parent=1 // pred_check_branch
      %45 = sbr.rel (0) target = $region13
    $region12: #{tpu_custom_call.1} parent=1 // pred_region
      %s47 = ssub.s32 4096, 4096
      %48 = vsyncadd [#allocation6], %s47
      %s49 = sshll.u32 [#allocation7], 4
      %s50 = int_to_ptr.vmem [resolvable:$true] %s49
      %55 = dma.hbm_to_vmem [thread:$0]  %s2, 4096, %s50, [#allocation6], 128, 128, 8
    $region13: #{tpu_custom_call.1} parent=1 // pred_fallthru
      _
    // Predicated region
    $region14: #{tpu_custom_call.1} parent=1 // pred_check
      _
    $region15: #{tpu_custom_call.1} parent=1 // pred_check_branch
      %57 = sbr.rel (0) target = $region17
    $region16: #{tpu_custom_call.1} parent=1 // pred_region
      %s59 = ssub.s32 2048, 2048
      %60 = vsyncadd [#allocation9], %s59
      %s61 = sshll.u32 [#allocation8], 4
      %s62 = int_to_ptr.vmem [resolvable:$true] %s61
      %67 = dma.hbm_to_vmem [thread:$0]  %s3, 2048, %s62, [#allocation9], 128, 128, 8
    $region17: #{tpu_custom_call.1} parent=1 // pred_fallthru
      _
    // Predicated region
    $region18: #{tpu_custom_call.1} parent=1 // pred_check
      _
    $region19: #{tpu_custom_call.1} parent=1 // pred_check_branch
      %69 = sbr.rel (0) target = $region21
    $region20: #{tpu_custom_call.1} parent=1 // pred_region
      %s71 = ssub.s32 2048, 2048
      %72 = vsyncadd [#allocation9], %s71
      %s73 = sshll.u32 [#allocation10], 4
      %s74 = int_to_ptr.vmem [resolvable:$true] %s73
      %79 = dma.hbm_to_vmem [thread:$0]  %s4, 2048, %s74, [#allocation9], 128, 128, 8
    $region21: #{tpu_custom_call.1} parent=1 // pred_fallthru
      _
    // Predicated region
    $region22: #{tpu_custom_call.1} parent=1 // pred_check
      _
    $region23: #{tpu_custom_call.1} parent=1 // pred_check_branch
      %81 = sbr.rel (0) target = $region25
    $region24: #{tpu_custom_call.1} parent=1 // pred_region
      %s83 = ssub.s32 2048, 2048
      %84 = vsyncadd [#allocation12], %s83
      %s85 = sshll.u32 [#allocation11], 4
      %s86 = int_to_ptr.vmem [resolvable:$true] %s85
      %91 = dma.hbm_to_vmem [thread:$0]  %s5, 2048, %s86, [#allocation12], 128, 128, 8
    $region25: #{tpu_custom_call.1} parent=1 // pred_fallthru
      _
    // Predicated region
    $region26: #{tpu_custom_call.1} parent=1 // pred_check
      _
    $region27: #{tpu_custom_call.1} parent=1 // pred_check_branch
      %93 = sbr.rel (0) target = $region29
    $region28: #{tpu_custom_call.1} parent=1 // pred_region
      _
    $region29: #{tpu_custom_call.1} parent=1 // pred_fallthru
      _
    // Predicated region
    $region30: #{tpu_custom_call.1} parent=1 // pred_check
      _
    $region31: #{tpu_custom_call.1} parent=1 // pred_check_branch
      %95 = sbr.rel (0) target = $region33
    $region32: #{tpu_custom_call.1} parent=1 // pred_region
      %96 = dma.done [#allocation3], 256
    $region33: #{tpu_custom_call.1} parent=1 // pred_fallthru
      _
    // Predicated region
    $region34: #{tpu_custom_call.1} parent=1 // pred_check
      _
    $region35: #{tpu_custom_call.1} parent=1 // pred_check_branch
      %98 = sbr.rel (0) target = $region37
    $region36: #{tpu_custom_call.1} parent=1 // pred_region
      %99 = dma.done [#allocation6], 4096
    $region37: #{tpu_custom_call.1} parent=1 // pred_fallthru
      _
    // Predicated region
    $region38: #{tpu_custom_call.1} parent=1 // pred_check
      _
    $region39: #{tpu_custom_call.1} parent=1 // pred_check_branch
      %101 = sbr.rel (0) target = $region41
    $region40: #{tpu_custom_call.1} parent=1 // pred_region
      %102 = dma.done [#allocation6], 4096
    $region41: #{tpu_custom_call.1} parent=1 // pred_fallthru
      _
    // Predicated region
    $region42: #{tpu_custom_call.1} parent=1 // pred_check
      _
    $region43: #{tpu_custom_call.1} parent=1 // pred_check_branch
      %104 = sbr.rel (0) target = $region45
    $region44: #{tpu_custom_call.1} parent=1 // pred_region
      %105 = dma.done [#allocation9], 2048
    $region45: #{tpu_custom_call.1} parent=1 // pred_fallthru
      _
    // Predicated region
    $region46: #{tpu_custom_call.1} parent=1 // pred_check
      _
    $region47: #{tpu_custom_call.1} parent=1 // pred_check_branch
      %107 = sbr.rel (0) target = $region49
    $region48: #{tpu_custom_call.1} parent=1 // pred_region
      %108 = dma.done [#allocation9], 2048
    $region49: #{tpu_custom_call.1} parent=1 // pred_fallthru
      _
    // Predicated region
    $region50: #{tpu_custom_call.1} parent=1 // pred_check
      _
    $region51: #{tpu_custom_call.1} parent=1 // pred_check_branch
      %110 = sbr.rel (0) target = $region53
    $region52: #{tpu_custom_call.1} parent=1 // pred_region
      %111 = dma.done [#allocation12], 2048
    $region53: #{tpu_custom_call.1} parent=1 // pred_fallthru
      _
    %v112 = vld [vmem:[#allocation2] sm:$0xff]
    %v113 = vld [vmem:[#allocation2 + $0x8] sm:$0xff]
    %v114 = vld [vmem:[#allocation8] sm:$0xff]
    %v115 = vld [vmem:[#allocation8 + $0x8] sm:$0xff]
    %v116 = vld [vmem:[#allocation8 + $0x10] sm:$0xff]
    %v117 = vld [vmem:[#allocation8 + $0x18] sm:$0xff]
    %v118 = vld [vmem:[#allocation8 + $0x20] sm:$0xff]
    %v119 = vld [vmem:[#allocation8 + $0x28] sm:$0xff]
    %v120 = vld [vmem:[#allocation8 + $0x30] sm:$0xff]
    %v121 = vld [vmem:[#allocation8 + $0x38] sm:$0xff]
    %v122 = vld [vmem:[#allocation8 + $0x40] sm:$0xff]
    %v123 = vld [vmem:[#allocation8 + $0x48] sm:$0xff]
    %v124 = vld [vmem:[#allocation8 + $0x50] sm:$0xff]
    %v125 = vld [vmem:[#allocation8 + $0x58] sm:$0xff]
    %v126 = vld [vmem:[#allocation8 + $0x60] sm:$0xff]
    %v127 = vld [vmem:[#allocation8 + $0x68] sm:$0xff]
    %v128 = vld [vmem:[#allocation8 + $0x70] sm:$0xff]
    %v129 = vld [vmem:[#allocation8 + $0x78] sm:$0xff]
    %130 = vmatprep.subr.mxu0 0.0
    %131 = vmatpush1.msra.mxu0 %v114
    %132 = vmatprep.subr.mxu0 0.0
    %133 = vmatpush1.msra.mxu0 %v115
    %134 = vmatprep.subr.mxu0 0.0
    %135 = vmatpush1.msra.mxu0 %v116
    %136 = vmatprep.subr.mxu0 0.0
    %137 = vmatpush1.msra.mxu0 %v117
    %138 = vmatprep.subr.mxu0 0.0
    %139 = vmatpush1.msra.mxu0 %v118
    %140 = vmatprep.subr.mxu0 0.0
    %141 = vmatpush1.msra.mxu0 %v119
    %142 = vmatprep.subr.mxu0 0.0
    %143 = vmatpush1.msra.mxu0 %v120
    %144 = vmatprep.subr.mxu0 0.0
    %145 = vmatpush1.msra.mxu0 %v121
    %146 = vmatprep.subr.mxu0 0.0
    %147 = vmatpush1.msra.mxu0 %v122
    %148 = vmatprep.subr.mxu0 0.0
    %149 = vmatpush1.msra.mxu0 %v123
    %150 = vmatprep.subr.mxu0 0.0
    %151 = vmatpush1.msra.mxu0 %v124
    %152 = vmatprep.subr.mxu0 0.0
    %153 = vmatpush1.msra.mxu0 %v125
    %154 = vmatprep.subr.mxu0 0.0
    %155 = vmatpush1.msra.mxu0 %v126
    %156 = vmatprep.subr.mxu0 0.0
    %157 = vmatpush1.msra.mxu0 %v127
    %158 = vmatprep.subr.mxu0 0.0
    %159 = vmatpush1.msra.mxu0 %v128
    %160 = vmatprep.subr.mxu0 0.0
    %161 = vmatpush1.msra.mxu0 %v129
    %162 = vmatprep.subr.mxu0 0.0
    %163 = vmatpush1.msra.mxu0 0.0
    %164 = vmatprep.subr.mxu0 0.0
    %165 = vmatpush1.msra.mxu0 0.0
    %166 = vmatprep.subr.mxu0 0.0
    %167 = vmatpush1.msra.mxu0 0.0
    %168 = vmatprep.subr.mxu0 0.0
    %169 = vmatpush1.msra.mxu0 0.0
    %170 = vmatprep.subr.mxu0 0.0
    %171 = vmatpush1.msra.mxu0 0.0
    %172 = vmatprep.subr.mxu0 0.0
    %173 = vmatpush1.msra.mxu0 0.0
    %174 = vmatprep.subr.mxu0 0.0
    %175 = vmatpush1.msra.mxu0 0.0
    %176 = vmatprep.subr.mxu0 0.0
    %177 = vmatpush1.msra.mxu0 0.0
    %178 = vmatprep.subr.mxu0 0.0
    %179 = vmatpush1.msra.mxu0 0.0
    %180 = vmatprep.subr.mxu0 0.0
    %181 = vmatpush1.msra.mxu0 0.0
    %182 = vmatprep.subr.mxu0 0.0
    %183 = vmatpush1.msra.mxu0 0.0
    %184 = vmatprep.subr.mxu0 0.0
    %185 = vmatpush1.msra.mxu0 0.0
    %186 = vmatprep.subr.mxu0 0.0
    %187 = vmatpush1.msra.mxu0 0.0
    %188 = vmatprep.subr.mxu0 0.0
    %189 = vmatpush1.msra.mxu0 0.0
    %190 = vmatprep.subr.mxu0 0.0
    %191 = vmatpush1.msra.mxu0 0.0
    %192 = vmatprep.subr.mxu0 0.0
    %193 = vmatpush1.msra.mxu0 0.0
    %194 = vmatprep.mubr.f32.mxu0 0.0
    %195 = vmatmul.mubr.f32.gmra.mrb[0].mxu0 %v112
    %v196 = vpop.f32.mrb[0].mxu0
    %v197 = vadd.f32 0.0, %v196
    %v198 = vpop.f32.mrb[0].mxu0
    %199 = vmatprep.mubr.f32.mxu0 0.0
    %200 = vmatmul.mubr.f32.gmra.mrb[0].mxu0 %v113
    %v201 = vpop.f32.mrb[0].mxu0
    %v202 = vadd.f32 0.0, %v201
    %v203 = vpop.f32.mrb[0].mxu0
    %204 = vdwg.mxu0
    %v205 = vld [vmem:[#allocation11] sm:$0xff]
    %v206 = vld [vmem:[#allocation11 + $0x8] sm:$0xff]
    %v207 = vld [vmem:[#allocation11 + $0x10] sm:$0xff]
    %v208 = vld [vmem:[#allocation11 + $0x18] sm:$0xff]
    %v209 = vld [vmem:[#allocation11 + $0x20] sm:$0xff]
    %v210 = vld [vmem:[#allocation11 + $0x28] sm:$0xff]
    %v211 = vld [vmem:[#allocation11 + $0x30] sm:$0xff]
    %v212 = vld [vmem:[#allocation11 + $0x38] sm:$0xff]
    %v213 = vld [vmem:[#allocation11 + $0x40] sm:$0xff]
    %v214 = vld [vmem:[#allocation11 + $0x48] sm:$0xff]
    %v215 = vld [vmem:[#allocation11 + $0x50] sm:$0xff]
    %v216 = vld [vmem:[#allocation11 + $0x58] sm:$0xff]
    %v217 = vld [vmem:[#allocation11 + $0x60] sm:$0xff]
    %v218 = vld [vmem:[#allocation11 + $0x68] sm:$0xff]
    %v219 = vld [vmem:[#allocation11 + $0x70] sm:$0xff]
    %v220 = vld [vmem:[#allocation11 + $0x78] sm:$0xff]
    %221 = vmatprep.subr.mxu0 0.0
    %222 = vmatpush1.msra.mxu0 %v205
    %223 = vmatprep.subr.mxu0 0.0
    %224 = vmatpush1.msra.mxu0 %v206
    %225 = vmatprep.subr.mxu0 0.0
    %226 = vmatpush1.msra.mxu0 %v207
    %227 = vmatprep.subr.mxu0 0.0
    %228 = vmatpush1.msra.mxu0 %v208
    %229 = vmatprep.subr.mxu0 0.0
    %230 = vmatpush1.msra.mxu0 %v209
    %231 = vmatprep.subr.mxu0 0.0
    %232 = vmatpush1.msra.mxu0 %v210
    %233 = vmatprep.subr.mxu0 0.0
    %234 = vmatpush1.msra.mxu0 %v211
    %235 = vmatprep.subr.mxu0 0.0
    %236 = vmatpush1.msra.mxu0 %v212
    %237 = vmatprep.subr.mxu0 0.0
    %238 = vmatpush1.msra.mxu0 %v213
    %239 = vmatprep.subr.mxu0 0.0
    %240 = vmatpush1.msra.mxu0 %v214
    %241 = vmatprep.subr.mxu0 0.0
    %242 = vmatpush1.msra.mxu0 %v215
    %243 = vmatprep.subr.mxu0 0.0
    %244 = vmatpush1.msra.mxu0 %v216
    %245 = vmatprep.subr.mxu0 0.0
    %246 = vmatpush1.msra.mxu0 %v217
    %247 = vmatprep.subr.mxu0 0.0
    %248 = vmatpush1.msra.mxu0 %v218
    %249 = vmatprep.subr.mxu0 0.0
    %250 = vmatpush1.msra.mxu0 %v219
    %251 = vmatprep.subr.mxu0 0.0
    %252 = vmatpush1.msra.mxu0 %v220
    %253 = vmatprep.subr.mxu0 0.0
    %254 = vmatpush1.msra.mxu0 0.0
    %255 = vmatprep.subr.mxu0 0.0
    %256 = vmatpush1.msra.mxu0 0.0
    %257 = vmatprep.subr.mxu0 0.0
    %258 = vmatpush1.msra.mxu0 0.0
    %259 = vmatprep.subr.mxu0 0.0
    %260 = vmatpush1.msra.mxu0 0.0
    %261 = vmatprep.subr.mxu0 0.0
    %262 = vmatpush1.msra.mxu0 0.0
    %263 = vmatprep.subr.mxu0 0.0
    %264 = vmatpush1.msra.mxu0 0.0
    %265 = vmatprep.subr.mxu0 0.0
    %266 = vmatpush1.msra.mxu0 0.0
    %267 = vmatprep.subr.mxu0 0.0
    %268 = vmatpush1.msra.mxu0 0.0
    %269 = vmatprep.subr.mxu0 0.0
    %270 = vmatpush1.msra.mxu0 0.0
    %271 = vmatprep.subr.mxu0 0.0
    %272 = vmatpush1.msra.mxu0 0.0
    %273 = vmatprep.subr.mxu0 0.0
    %274 = vmatpush1.msra.mxu0 0.0
    %275 = vmatprep.subr.mxu0 0.0
    %276 = vmatpush1.msra.mxu0 0.0
    %277 = vmatprep.subr.mxu0 0.0
    %278 = vmatpush1.msra.mxu0 0.0
    %279 = vmatprep.subr.mxu0 0.0
    %280 = vmatpush1.msra.mxu0 0.0
    %281 = vmatprep.subr.mxu0 0.0
    %282 = vmatpush1.msra.mxu0 0.0
    %283 = vmatprep.subr.mxu0 0.0
    %284 = vmatpush1.msra.mxu0 0.0
    %285 = vmatprep.mubr.f32.mxu0 0.0
    %286 = vmatmul.mubr.f32.gmra.mrb[0].mxu0 %v112
    %v287 = vpop.f32.mrb[0].mxu0
    %v288 = vadd.f32 0.0, %v287
    %v289 = vpop.f32.mrb[0].mxu0
    %290 = vmatprep.mubr.f32.mxu0 0.0
    %291 = vmatmul.mubr.f32.gmra.mrb[0].mxu0 %v113
    %v292 = vpop.f32.mrb[0].mxu0
    %v293 = vadd.f32 0.0, %v292
    %v294 = vpop.f32.mrb[0].mxu0
    %295 = vdwg.mxu0
    %v296 = vld [vmem:[#allocation7] sm:$0xff]
    %v297 = vld [vmem:[#allocation7 + $0x8] sm:$0xff]
    %v298 = vld [vmem:[#allocation7 + $0x10] sm:$0xff]
    %v299 = vld [vmem:[#allocation7 + $0x18] sm:$0xff]
    %v300 = vld [vmem:[#allocation7 + $0x20] sm:$0xff]
    %v301 = vld [vmem:[#allocation7 + $0x28] sm:$0xff]
    %v302 = vld [vmem:[#allocation7 + $0x30] sm:$0xff]
    %v303 = vld [vmem:[#allocation7 + $0x38] sm:$0xff]
    %v304 = vld [vmem:[#allocation7 + $0x40] sm:$0xff]
    %v305 = vld [vmem:[#allocation7 + $0x48] sm:$0xff]
    %v306 = vld [vmem:[#allocation7 + $0x50] sm:$0xff]
    %v307 = vld [vmem:[#allocation7 + $0x58] sm:$0xff]
    %v308 = vld [vmem:[#allocation7 + $0x60] sm:$0xff]
    %v309 = vld [vmem:[#allocation7 + $0x68] sm:$0xff]
    %v310 = vld [vmem:[#allocation7 + $0x70] sm:$0xff]
    %v311 = vld [vmem:[#allocation7 + $0x78] sm:$0xff]
    %v312 = vld [vmem:[#allocation7 + $0x80] sm:$0xff]
    %v313 = vld [vmem:[#allocation7 + $0x88] sm:$0xff]
    %v314 = vld [vmem:[#allocation7 + $0x90] sm:$0xff]
    %v315 = vld [vmem:[#allocation7 + $0x98] sm:$0xff]
    %v316 = vld [vmem:[#allocation7 + $0xa0] sm:$0xff]
    %v317 = vld [vmem:[#allocation7 + $0xa8] sm:$0xff]
    %v318 = vld [vmem:[#allocation7 + $0xb0] sm:$0xff]
    %v319 = vld [vmem:[#allocation7 + $0xb8] sm:$0xff]
    %v320 = vld [vmem:[#allocation7 + $0xc0] sm:$0xff]
    %v321 = vld [vmem:[#allocation7 + $0xc8] sm:$0xff]
    %v322 = vld [vmem:[#allocation7 + $0xd0] sm:$0xff]
    %v323 = vld [vmem:[#allocation7 + $0xd8] sm:$0xff]
    %v324 = vld [vmem:[#allocation7 + $0xe0] sm:$0xff]
    %v325 = vld [vmem:[#allocation7 + $0xe8] sm:$0xff]
    %v326 = vld [vmem:[#allocation7 + $0xf0] sm:$0xff]
    %v327 = vld [vmem:[#allocation7 + $0xf8] sm:$0xff]
    %328 = vmatprep.subr.mxu0 0.0
    %329 = vmatpush1.msra.mxu0 %v296
    %330 = vmatprep.subr.mxu0 0.0
    %331 = vmatpush1.msra.mxu0 %v297
    %332 = vmatprep.subr.mxu0 0.0
    %333 = vmatpush1.msra.mxu0 %v298
    %334 = vmatprep.subr.mxu0 0.0
    %335 = vmatpush1.msra.mxu0 %v299
    %336 = vmatprep.subr.mxu0 0.0
    %337 = vmatpush1.msra.mxu0 %v300
    %338 = vmatprep.subr.mxu0 0.0
    %339 = vmatpush1.msra.mxu0 %v301
    %340 = vmatprep.subr.mxu0 0.0
    %341 = vmatpush1.msra.mxu0 %v302
    %342 = vmatprep.subr.mxu0 0.0
    %343 = vmatpush1.msra.mxu0 %v303
    %344 = vmatprep.subr.mxu0 0.0
    %345 = vmatpush1.msra.mxu0 %v304
    %346 = vmatprep.subr.mxu0 0.0
    %347 = vmatpush1.msra.mxu0 %v305
    %348 = vmatprep.subr.mxu0 0.0
    %349 = vmatpush1.msra.mxu0 %v306
    %350 = vmatprep.subr.mxu0 0.0
    %351 = vmatpush1.msra.mxu0 %v307
    %352 = vmatprep.subr.mxu0 0.0
    %353 = vmatpush1.msra.mxu0 %v308
    %354 = vmatprep.subr.mxu0 0.0
    %355 = vmatpush1.msra.mxu0 %v309
    %356 = vmatprep.subr.mxu0 0.0
    %357 = vmatpush1.msra.mxu0 %v310
    %358 = vmatprep.subr.mxu0 0.0
    %359 = vmatpush1.msra.mxu0 %v311
    %360 = vmatprep.subr.mxu0 0.0
    %361 = vmatpush1.msra.mxu0 0.0
    %362 = vmatprep.subr.mxu0 0.0
    %363 = vmatpush1.msra.mxu0 0.0
    %364 = vmatprep.subr.mxu0 0.0
    %365 = vmatpush1.msra.mxu0 0.0
    %366 = vmatprep.subr.mxu0 0.0
    %367 = vmatpush1.msra.mxu0 0.0
    %368 = vmatprep.subr.mxu0 0.0
    %369 = vmatpush1.msra.mxu0 0.0
    %370 = vmatprep.subr.mxu0 0.0
    %371 = vmatpush1.msra.mxu0 0.0
    %372 = vmatprep.subr.mxu0 0.0
    %373 = vmatpush1.msra.mxu0 0.0
    %374 = vmatprep.subr.mxu0 0.0
    %375 = vmatpush1.msra.mxu0 0.0
    %376 = vmatprep.subr.mxu0 0.0
    %377 = vmatpush1.msra.mxu0 0.0
    %378 = vmatprep.subr.mxu0 0.0
    %379 = vmatpush1.msra.mxu0 0.0
    %380 = vmatprep.subr.mxu0 0.0
    %381 = vmatpush1.msra.mxu0 0.0
    %382 = vmatprep.subr.mxu0 0.0
    %383 = vmatpush1.msra.mxu0 0.0
    %384 = vmatprep.subr.mxu0 0.0
    %385 = vmatpush1.msra.mxu0 0.0
    %386 = vmatprep.subr.mxu0 0.0
    %387 = vmatpush1.msra.mxu0 0.0
    %388 = vmatprep.subr.mxu0 0.0
    %389 = vmatpush1.msra.mxu0 0.0
    %390 = vmatprep.subr.mxu0 0.0
    %391 = vmatpush1.msra.mxu0 0.0
    %392 = vmatprep.mubr.f32.mxu0 0.0
    %393 = vmatmul.mubr.f32.gmra.mrb[0].mxu0 %v197
    %v394 = vpop.f32.mrb[0].mxu0
    %v395 = vadd.f32 0.0, %v394
    %v396 = vpop.f32.mrb[0].mxu0
    %397 = vdwg.mxu0
    %398 = vmatprep.subr.mxu0 0.0
    %399 = vmatpush1.msra.mxu0 %v312
    %400 = vmatprep.subr.mxu0 0.0
    %401 = vmatpush1.msra.mxu0 %v313
    %402 = vmatprep.subr.mxu0 0.0
    %403 = vmatpush1.msra.mxu0 %v314
    %404 = vmatprep.subr.mxu0 0.0
    %405 = vmatpush1.msra.mxu0 %v315
    %406 = vmatprep.subr.mxu0 0.0
    %407 = vmatpush1.msra.mxu0 %v316
    %408 = vmatprep.subr.mxu0 0.0
    %409 = vmatpush1.msra.mxu0 %v317
    %410 = vmatprep.subr.mxu0 0.0
    %411 = vmatpush1.msra.mxu0 %v318
    %412 = vmatprep.subr.mxu0 0.0
    %413 = vmatpush1.msra.mxu0 %v319
    %414 = vmatprep.subr.mxu0 0.0
    %415 = vmatpush1.msra.mxu0 %v320
    %416 = vmatprep.subr.mxu0 0.0
    %417 = vmatpush1.msra.mxu0 %v321
    %418 = vmatprep.subr.mxu0 0.0
    %419 = vmatpush1.msra.mxu0 %v322
    %420 = vmatprep.subr.mxu0 0.0
    %421 = vmatpush1.msra.mxu0 %v323
    %422 = vmatprep.subr.mxu0 0.0
    %423 = vmatpush1.msra.mxu0 %v324
    %424 = vmatprep.subr.mxu0 0.0
    %425 = vmatpush1.msra.mxu0 %v325
    %426 = vmatprep.subr.mxu0 0.0
    %427 = vmatpush1.msra.mxu0 %v326
    %428 = vmatprep.subr.mxu0 0.0
    %429 = vmatpush1.msra.mxu0 %v327
    %430 = vmatprep.subr.mxu0 0.0
    %431 = vmatpush1.msra.mxu0 0.0
    %432 = vmatprep.subr.mxu0 0.0
    %433 = vmatpush1.msra.mxu0 0.0
    %434 = vmatprep.subr.mxu0 0.0
    %435 = vmatpush1.msra.mxu0 0.0
    %436 = vmatprep.subr.mxu0 0.0
    %437 = vmatpush1.msra.mxu0 0.0
    %438 = vmatprep.subr.mxu0 0.0
    %439 = vmatpush1.msra.mxu0 0.0
    %440 = vmatprep.subr.mxu0 0.0
    %441 = vmatpush1.msra.mxu0 0.0
    %442 = vmatprep.subr.mxu0 0.0
    %443 = vmatpush1.msra.mxu0 0.0
    %444 = vmatprep.subr.mxu0 0.0
    %445 = vmatpush1.msra.mxu0 0.0
    %446 = vmatprep.subr.mxu0 0.0
    %447 = vmatpush1.msra.mxu0 0.0
    %448 = vmatprep.subr.mxu0 0.0
    %449 = vmatpush1.msra.mxu0 0.0
    %450 = vmatprep.subr.mxu0 0.0
    %451 = vmatpush1.msra.mxu0 0.0
    %452 = vmatprep.subr.mxu0 0.0
    %453 = vmatpush1.msra.mxu0 0.0
    %454 = vmatprep.subr.mxu0 0.0
    %455 = vmatpush1.msra.mxu0 0.0
    %456 = vmatprep.subr.mxu0 0.0
    %457 = vmatpush1.msra.mxu0 0.0
    %458 = vmatprep.subr.mxu0 0.0
    %459 = vmatpush1.msra.mxu0 0.0
    %460 = vmatprep.subr.mxu0 0.0
    %461 = vmatpush1.msra.mxu0 0.0
    %462 = vmatprep.mubr.f32.mxu0 0.0
    %463 = vmatmul.mubr.f32.gmra.mrb[0].mxu0 %v202
    %v464 = vpop.f32.mrb[0].mxu0
    %v465 = vadd.f32 0.0, %v464
    %v466 = vpop.f32.mrb[0].mxu0
    %467 = vdwg.mxu0
    %v468 = vlaneseq
    %v469 = vand.u32 %v468, 127
    %vm470 = vcmp.lt.s32.totalorder %v469, 16
    %v471 = vsel %vm470, %v395, -1e+30
    %v472 = vsel %vm470, %v465, -1e+30
    %473 = vmax.xlane.f32.xlu0 %v471
    %v474 = vpop.xlane.xlu0 %473
    %475 = vmax.xlane.f32.xlu0 %v472
    %v476 = vpop.xlane.xlu0 %475
    %v477 = vsub.f32 %v471, %v474
    %v478 = vsub.f32 %v472, %v476
    %v479 = vmul.f32 %v477, 1.442695
    %v480 = vpow.pop %v479
    %v481 = vmul.f32 %v478, 1.442695
    %v482 = vpow.pop %v481
    %483 = vadd.xlane.f32.xlu0 %v480
    %v484 = vpop.xlane.xlu0 %483
    %485 = vadd.xlane.f32.xlu0 %v482
    %v486 = vpop.xlane.xlu0 %485
    %v487 = vrcp.pop %v484
    %v488 = vrcp.pop %v486
    %v489 = vmul.f32 %v480, %v487
    %v490 = vmul.f32 %v482, %v488
    %v491 = vld [vmem:[#allocation5] sm:$0xff]
    %v492 = vld [vmem:[#allocation5 + $0x8] sm:$0xff]
    %v493 = vld [vmem:[#allocation5 + $0x10] sm:$0xff]
    %v494 = vld [vmem:[#allocation5 + $0x18] sm:$0xff]
    %v495 = vld [vmem:[#allocation5 + $0x20] sm:$0xff]
    %v496 = vld [vmem:[#allocation5 + $0x28] sm:$0xff]
    %v497 = vld [vmem:[#allocation5 + $0x30] sm:$0xff]
    %v498 = vld [vmem:[#allocation5 + $0x38] sm:$0xff]
    %v499 = vld [vmem:[#allocation5 + $0x40] sm:$0xff]
    %v500 = vld [vmem:[#allocation5 + $0x48] sm:$0xff]
    %v501 = vld [vmem:[#allocation5 + $0x50] sm:$0xff]
    %v502 = vld [vmem:[#allocation5 + $0x58] sm:$0xff]
    %v503 = vld [vmem:[#allocation5 + $0x60] sm:$0xff]
    %v504 = vld [vmem:[#allocation5 + $0x68] sm:$0xff]
    %v505 = vld [vmem:[#allocation5 + $0x70] sm:$0xff]
    %v506 = vld [vmem:[#allocation5 + $0x78] sm:$0xff]
    %v507 = vld [vmem:[#allocation5 + $0x80] sm:$0xff]
    %v508 = vld [vmem:[#allocation5 + $0x88] sm:$0xff]
    %v509 = vld [vmem:[#allocation5 + $0x90] sm:$0xff]
    %v510 = vld [vmem:[#allocation5 + $0x98] sm:$0xff]
    %v511 = vld [vmem:[#allocation5 + $0xa0] sm:$0xff]
    %v512 = vld [vmem:[#allocation5 + $0xa8] sm:$0xff]
    %v513 = vld [vmem:[#allocation5 + $0xb0] sm:$0xff]
    %v514 = vld [vmem:[#allocation5 + $0xb8] sm:$0xff]
    %v515 = vld [vmem:[#allocation5 + $0xc0] sm:$0xff]
    %v516 = vld [vmem:[#allocation5 + $0xc8] sm:$0xff]
    %v517 = vld [vmem:[#allocation5 + $0xd0] sm:$0xff]
    %v518 = vld [vmem:[#allocation5 + $0xd8] sm:$0xff]
    %v519 = vld [vmem:[#allocation5 + $0xe0] sm:$0xff]
    %v520 = vld [vmem:[#allocation5 + $0xe8] sm:$0xff]
    %v521 = vld [vmem:[#allocation5 + $0xf0] sm:$0xff]
    %v522 = vld [vmem:[#allocation5 + $0xf8] sm:$0xff]
    %523 = vmatprep.subr.mxu0 0.0
    %524 = vmatpush1.msra.mxu0 %v491
    %525 = vmatprep.subr.mxu0 0.0
    %526 = vmatpush1.msra.mxu0 %v492
    %527 = vmatprep.subr.mxu0 0.0
    %528 = vmatpush1.msra.mxu0 %v493
    %529 = vmatprep.subr.mxu0 0.0
    %530 = vmatpush1.msra.mxu0 %v494
    %531 = vmatprep.subr.mxu0 0.0
    %532 = vmatpush1.msra.mxu0 %v495
    %533 = vmatprep.subr.mxu0 0.0
    %534 = vmatpush1.msra.mxu0 %v496
    %535 = vmatprep.subr.mxu0 0.0
    %536 = vmatpush1.msra.mxu0 %v497
    %537 = vmatprep.subr.mxu0 0.0
    %538 = vmatpush1.msra.mxu0 %v498
    %539 = vmatprep.subr.mxu0 0.0
    %540 = vmatpush1.msra.mxu0 %v499
    %541 = vmatprep.subr.mxu0 0.0
    %542 = vmatpush1.msra.mxu0 %v500
    %543 = vmatprep.subr.mxu0 0.0
    %544 = vmatpush1.msra.mxu0 %v501
    %545 = vmatprep.subr.mxu0 0.0
    %546 = vmatpush1.msra.mxu0 %v502
    %547 = vmatprep.subr.mxu0 0.0
    %548 = vmatpush1.msra.mxu0 %v503
    %549 = vmatprep.subr.mxu0 0.0
    %550 = vmatpush1.msra.mxu0 %v504
    %551 = vmatprep.subr.mxu0 0.0
    %552 = vmatpush1.msra.mxu0 %v505
    %553 = vmatprep.subr.mxu0 0.0
    %554 = vmatpush1.msra.mxu0 %v506
    %555 = vmatprep.subr.mxu0 0.0
    %556 = vmatpush1.msra.mxu0 0.0
    %557 = vmatprep.subr.mxu0 0.0
    %558 = vmatpush1.msra.mxu0 0.0
    %559 = vmatprep.subr.mxu0 0.0
    %560 = vmatpush1.msra.mxu0 0.0
    %561 = vmatprep.subr.mxu0 0.0
    %562 = vmatpush1.msra.mxu0 0.0
    %563 = vmatprep.subr.mxu0 0.0
    %564 = vmatpush1.msra.mxu0 0.0
    %565 = vmatprep.subr.mxu0 0.0
    %566 = vmatpush1.msra.mxu0 0.0
    %567 = vmatprep.subr.mxu0 0.0
    %568 = vmatpush1.msra.mxu0 0.0
    %569 = vmatprep.subr.mxu0 0.0
    %570 = vmatpush1.msra.mxu0 0.0
    %571 = vmatprep.subr.mxu0 0.0
    %572 = vmatpush1.msra.mxu0 0.0
    %573 = vmatprep.subr.mxu0 0.0
    %574 = vmatpush1.msra.mxu0 0.0
    %575 = vmatprep.subr.mxu0 0.0
    %576 = vmatpush1.msra.mxu0 0.0
    %577 = vmatprep.subr.mxu0 0.0
    %578 = vmatpush1.msra.mxu0 0.0
    %579 = vmatprep.subr.mxu0 0.0
    %580 = vmatpush1.msra.mxu0 0.0
    %581 = vmatprep.subr.mxu0 0.0
    %582 = vmatpush1.msra.mxu0 0.0
    %583 = vmatprep.subr.mxu0 0.0
    %584 = vmatpush1.msra.mxu0 0.0
    %585 = vmatprep.subr.mxu0 0.0
    %586 = vmatpush1.msra.mxu0 0.0
    %587 = vmatprep.mubr.f32.mxu0 0.0
    %588 = vmatmul.mubr.f32.gmra.mrb[0].mxu0 %v489
    %v589 = vpop.f32.mrb[0].mxu0
    %v590 = vadd.f32 0.0, %v589
    %v591 = vpop.f32.mrb[0].mxu0
    %592 = vdwg.mxu0
    %593 = vmatprep.subr.mxu0 0.0
    %594 = vmatpush1.msra.mxu0 %v507
    %595 = vmatprep.subr.mxu0 0.0
    %596 = vmatpush1.msra.mxu0 %v508
    %597 = vmatprep.subr.mxu0 0.0
    %598 = vmatpush1.msra.mxu0 %v509
    %599 = vmatprep.subr.mxu0 0.0
    %600 = vmatpush1.msra.mxu0 %v510
    %601 = vmatprep.subr.mxu0 0.0
    %602 = vmatpush1.msra.mxu0 %v511
    %603 = vmatprep.subr.mxu0 0.0
    %604 = vmatpush1.msra.mxu0 %v512
    %605 = vmatprep.subr.mxu0 0.0
    %606 = vmatpush1.msra.mxu0 %v513
    %607 = vmatprep.subr.mxu0 0.0
    %608 = vmatpush1.msra.mxu0 %v514
    %609 = vmatprep.subr.mxu0 0.0
    %610 = vmatpush1.msra.mxu0 %v515
    %611 = vmatprep.subr.mxu0 0.0
    %612 = vmatpush1.msra.mxu0 %v516
    %613 = vmatprep.subr.mxu0 0.0
    %614 = vmatpush1.msra.mxu0 %v517
    %615 = vmatprep.subr.mxu0 0.0
    %616 = vmatpush1.msra.mxu0 %v518
    %617 = vmatprep.subr.mxu0 0.0
    %618 = vmatpush1.msra.mxu0 %v519
    %619 = vmatprep.subr.mxu0 0.0
    %620 = vmatpush1.msra.mxu0 %v520
    %621 = vmatprep.subr.mxu0 0.0
    %622 = vmatpush1.msra.mxu0 %v521
    %623 = vmatprep.subr.mxu0 0.0
    %624 = vmatpush1.msra.mxu0 %v522
    %625 = vmatprep.subr.mxu0 0.0
    %626 = vmatpush1.msra.mxu0 0.0
    %627 = vmatprep.subr.mxu0 0.0
    %628 = vmatpush1.msra.mxu0 0.0
    %629 = vmatprep.subr.mxu0 0.0
    %630 = vmatpush1.msra.mxu0 0.0
    %631 = vmatprep.subr.mxu0 0.0
    %632 = vmatpush1.msra.mxu0 0.0
    %633 = vmatprep.subr.mxu0 0.0
    %634 = vmatpush1.msra.mxu0 0.0
    %635 = vmatprep.subr.mxu0 0.0
    %636 = vmatpush1.msra.mxu0 0.0
    %637 = vmatprep.subr.mxu0 0.0
    %638 = vmatpush1.msra.mxu0 0.0
    %639 = vmatprep.subr.mxu0 0.0
    %640 = vmatpush1.msra.mxu0 0.0
    %641 = vmatprep.subr.mxu0 0.0
    %642 = vmatpush1.msra.mxu0 0.0
    %643 = vmatprep.subr.mxu0 0.0
    %644 = vmatpush1.msra.mxu0 0.0
    %645 = vmatprep.subr.mxu0 0.0
    %646 = vmatpush1.msra.mxu0 0.0
    %647 = vmatprep.subr.mxu0 0.0
    %648 = vmatpush1.msra.mxu0 0.0
    %649 = vmatprep.subr.mxu0 0.0
    %650 = vmatpush1.msra.mxu0 0.0
    %651 = vmatprep.subr.mxu0 0.0
    %652 = vmatpush1.msra.mxu0 0.0
    %653 = vmatprep.subr.mxu0 0.0
    %654 = vmatpush1.msra.mxu0 0.0
    %655 = vmatprep.subr.mxu0 0.0
    %656 = vmatpush1.msra.mxu0 0.0
    %657 = vmatprep.mubr.f32.mxu0 0.0
    %658 = vmatmul.mubr.f32.gmra.mrb[0].mxu0 %v490
    %v659 = vpop.f32.mrb[0].mxu0
    %v660 = vadd.f32 0.0, %v659
    %v661 = vpop.f32.mrb[0].mxu0
    %662 = vdwg.mxu0
    %v663 = vld [vmem:[#allocation10] sm:$0xff]
    %v664 = vld [vmem:[#allocation10 + $0x8] sm:$0xff]
    %v665 = vld [vmem:[#allocation10 + $0x10] sm:$0xff]
    %v666 = vld [vmem:[#allocation10 + $0x18] sm:$0xff]
    %v667 = vld [vmem:[#allocation10 + $0x20] sm:$0xff]
    %v668 = vld [vmem:[#allocation10 + $0x28] sm:$0xff]
    %v669 = vld [vmem:[#allocation10 + $0x30] sm:$0xff]
    %v670 = vld [vmem:[#allocation10 + $0x38] sm:$0xff]
    %v671 = vld [vmem:[#allocation10 + $0x40] sm:$0xff]
    %v672 = vld [vmem:[#allocation10 + $0x48] sm:$0xff]
    %v673 = vld [vmem:[#allocation10 + $0x50] sm:$0xff]
    %v674 = vld [vmem:[#allocation10 + $0x58] sm:$0xff]
    %v675 = vld [vmem:[#allocation10 + $0x60] sm:$0xff]
    %v676 = vld [vmem:[#allocation10 + $0x68] sm:$0xff]
    %v677 = vld [vmem:[#allocation10 + $0x70] sm:$0xff]
    %v678 = vld [vmem:[#allocation10 + $0x78] sm:$0xff]
    %679 = vmatprep.subr.mxu0 0.0
    %680 = vmatpush1.msra.mxu0 %v663
    %681 = vmatprep.subr.mxu0 0.0
    %682 = vmatpush1.msra.mxu0 %v664
    %683 = vmatprep.subr.mxu0 0.0
    %684 = vmatpush1.msra.mxu0 %v665
    %685 = vmatprep.subr.mxu0 0.0
    %686 = vmatpush1.msra.mxu0 %v666
    %687 = vmatprep.subr.mxu0 0.0
    %688 = vmatpush1.msra.mxu0 %v667
    %689 = vmatprep.subr.mxu0 0.0
    %690 = vmatpush1.msra.mxu0 %v668
    %691 = vmatprep.subr.mxu0 0.0
    %692 = vmatpush1.msra.mxu0 %v669
    %693 = vmatprep.subr.mxu0 0.0
    %694 = vmatpush1.msra.mxu0 %v670
    %695 = vmatprep.subr.mxu0 0.0
    %696 = vmatpush1.msra.mxu0 %v671
    %697 = vmatprep.subr.mxu0 0.0
    %698 = vmatpush1.msra.mxu0 %v672
    %699 = vmatprep.subr.mxu0 0.0
    %700 = vmatpush1.msra.mxu0 %v673
    %701 = vmatprep.subr.mxu0 0.0
    %702 = vmatpush1.msra.mxu0 %v674
    %703 = vmatprep.subr.mxu0 0.0
    %704 = vmatpush1.msra.mxu0 %v675
    %705 = vmatprep.subr.mxu0 0.0
    %706 = vmatpush1.msra.mxu0 %v676
    %707 = vmatprep.subr.mxu0 0.0
    %708 = vmatpush1.msra.mxu0 %v677
    %709 = vmatprep.subr.mxu0 0.0
    %710 = vmatpush1.msra.mxu0 %v678
    %711 = vmatprep.subr.mxu0 0.0
    %712 = vmatpush1.msra.mxu0 0.0
    %713 = vmatprep.subr.mxu0 0.0
    %714 = vmatpush1.msra.mxu0 0.0
    %715 = vmatprep.subr.mxu0 0.0
    %716 = vmatpush1.msra.mxu0 0.0
    %717 = vmatprep.subr.mxu0 0.0
    %718 = vmatpush1.msra.mxu0 0.0
    %719 = vmatprep.subr.mxu0 0.0
    %720 = vmatpush1.msra.mxu0 0.0
    %721 = vmatprep.subr.mxu0 0.0
    %722 = vmatpush1.msra.mxu0 0.0
    %723 = vmatprep.subr.mxu0 0.0
    %724 = vmatpush1.msra.mxu0 0.0
    %725 = vmatprep.subr.mxu0 0.0
    %726 = vmatpush1.msra.mxu0 0.0
    %727 = vmatprep.subr.mxu0 0.0
    %728 = vmatpush1.msra.mxu0 0.0
    %729 = vmatprep.subr.mxu0 0.0
    %730 = vmatpush1.msra.mxu0 0.0
    %731 = vmatprep.subr.mxu0 0.0
    %732 = vmatpush1.msra.mxu0 0.0
    %733 = vmatprep.subr.mxu0 0.0
    %734 = vmatpush1.msra.mxu0 0.0
    %735 = vmatprep.subr.mxu0 0.0
    %736 = vmatpush1.msra.mxu0 0.0
    %737 = vmatprep.subr.mxu0 0.0
    %738 = vmatpush1.msra.mxu0 0.0
    %739 = vmatprep.subr.mxu0 0.0
    %740 = vmatpush1.msra.mxu0 0.0
    %741 = vmatprep.subr.mxu0 0.0
    %742 = vmatpush1.msra.mxu0 0.0
    %743 = vmatprep.mubr.f32.mxu0 0.0
    %744 = vmatmul.mubr.f32.gmra.mrb[0].mxu0 %v590
    %v745 = vpop.f32.mrb[0].mxu0
    %v746 = vadd.f32 %v288, %v745
    %v747 = vpop.f32.mrb[0].mxu0
    %748 = vmatprep.mubr.f32.mxu0 0.0
    %749 = vmatmul.mubr.f32.gmra.mrb[0].mxu0 %v660
    %v750 = vpop.f32.mrb[0].mxu0
    %v751 = vadd.f32 %v293, %v750
    %v752 = vpop.f32.mrb[0].mxu0
    %753 = vdwg.mxu0
    %v754 = vld [vmem:[%s6] sm:$0x1]
    %v756 = vlaneseq
    %v757 = vshrl.u32 %v756, 7
    %v758 = vsub.s32 0, %v757
    %v759 = vrot.slane %v754, %v758
    %v761 = vadd.f32 %v746, %v759
    %v762 = vadd.f32 %v751, %v759
    %v763 = vtanh.pop %v761
    %v764 = vtanh.pop %v762
    %v765 = vcombine.high %v763, 0.0
    %v767 = vunpack.c.l.s4 1983009808
    %v768 = vunpack.c.0.s8 %v767
    %v769 = vlaneseq
    %v770 = vshrl.u32 %v769, 7
    %v771 = vsub.s32 %v768, %v770
    %v772 = vrot.slane %v763, %v771
    %v774 = vunpack.c.l.s4 1983009808
    %v775 = vunpack.c.0.s8 %v774
    %v776 = vlaneseq
    %v777 = vshrl.u32 %v776, 7
    %v778 = vsub.s32 %v775, %v777
    %v779 = vrot.slane %v765, %v778
    %v780 = vcombine.high %v764, 0.0
    %v782 = vunpack.c.l.s4 1983009808
    %v783 = vunpack.c.0.s8 %v782
    %v784 = vlaneseq
    %v785 = vshrl.u32 %v784, 7
    %v786 = vsub.s32 %v783, %v785
    %v787 = vrot.slane %v764, %v786
    %v789 = vunpack.c.l.s4 1983009808
    %v790 = vunpack.c.0.s8 %v789
    %v791 = vlaneseq
    %v792 = vshrl.u32 %v791, 7
    %v793 = vsub.s32 %v790, %v792
    %v794 = vrot.slane %v780, %v793
    %v795 = vcombine.low %v772, %v787
    %v796 = vcombine.high %v772, %v787
    %v798 = vunpack.c.l.s4 1934713408
    %v799 = vunpack.c.0.s8 %v798
    %v800 = vlaneseq
    %v801 = vshrl.u32 %v800, 7
    %v802 = vsub.s32 %v799, %v801
    %v803 = vrot.slane %v795, %v802
    %v805 = vunpack.c.l.s4 1934713408
    %v806 = vunpack.c.0.s8 %v805
    %v807 = vlaneseq
    %v808 = vshrl.u32 %v807, 7
    %v809 = vsub.s32 %v806, %v808
    %v810 = vrot.slane %v796, %v809
    %v811 = vcombine.low %v779, %v794
    %v812 = vcombine.high %v779, %v794
    %v814 = vunpack.c.l.s4 1934713408
    %v815 = vunpack.c.0.s8 %v814
    %v816 = vlaneseq
    %v817 = vshrl.u32 %v816, 7
    %v818 = vsub.s32 %v815, %v817
    %v819 = vrot.slane %v811, %v818
    %v821 = vunpack.c.l.s4 1934713408
    %v822 = vunpack.c.0.s8 %v821
    %v823 = vlaneseq
    %v824 = vshrl.u32 %v823, 7
    %v825 = vsub.s32 %v822, %v824
    %v826 = vrot.slane %v812, %v825
    %v827 = vcombine.high %v803, 0.0
    %v828 = vcombine.high %v810, 0.0
    %v829 = vcombine.high %v819, 0.0
    %v830 = vcombine.high %v826, 0.0
    %831 = vst [vmem:[#allocation13] sm:$0x3] %v803
    %832 = vst [vmem:[#allocation13 + $0x2] sm:$0x3] %v827
    %833 = vst [vmem:[#allocation13 + $0x4] sm:$0x3] %v810
    %834 = vst [vmem:[#allocation13 + $0x6] sm:$0x3] %v828
    %835 = vst [vmem:[#allocation13 + $0x8] sm:$0x3] %v819
    %836 = vst [vmem:[#allocation13 + $0xa] sm:$0x3] %v829
    %837 = vst [vmem:[#allocation13 + $0xc] sm:$0x3] %v826
    %838 = vst [vmem:[#allocation13 + $0xe] sm:$0x3] %v830
    %v839 = vcombine.high %v489, 0.0
    %v841 = vunpack.c.l.s4 1983009808
    %v842 = vunpack.c.0.s8 %v841
    %v843 = vlaneseq
    %v844 = vshrl.u32 %v843, 7
    %v845 = vsub.s32 %v842, %v844
    %v846 = vrot.slane %v489, %v845
    %v848 = vunpack.c.l.s4 1983009808
    %v849 = vunpack.c.0.s8 %v848
    %v850 = vlaneseq
    %v851 = vshrl.u32 %v850, 7
    %v852 = vsub.s32 %v849, %v851
    %v853 = vrot.slane %v839, %v852
    %v854 = vcombine.high %v490, 0.0
    %v856 = vunpack.c.l.s4 1983009808
    %v857 = vunpack.c.0.s8 %v856
    %v858 = vlaneseq
    %v859 = vshrl.u32 %v858, 7
    %v860 = vsub.s32 %v857, %v859
    %v861 = vrot.slane %v490, %v860
    %v863 = vunpack.c.l.s4 1983009808
    %v864 = vunpack.c.0.s8 %v863
    %v865 = vlaneseq
    %v866 = vshrl.u32 %v865, 7
    %v867 = vsub.s32 %v864, %v866
    %v868 = vrot.slane %v854, %v867
    %v869 = vcombine.low %v846, %v861
    %v870 = vcombine.high %v846, %v861
    %v872 = vunpack.c.l.s4 1934713408
    %v873 = vunpack.c.0.s8 %v872
    %v874 = vlaneseq
    %v875 = vshrl.u32 %v874, 7
    %v876 = vsub.s32 %v873, %v875
    %v877 = vrot.slane %v869, %v876
    %v879 = vunpack.c.l.s4 1934713408
    %v880 = vunpack.c.0.s8 %v879
    %v881 = vlaneseq
    %v882 = vshrl.u32 %v881, 7
    %v883 = vsub.s32 %v880, %v882
    %v884 = vrot.slane %v870, %v883
    %v885 = vcombine.low %v853, %v868
    %v886 = vcombine.high %v853, %v868
    %v888 = vunpack.c.l.s4 1934713408
    %v889 = vunpack.c.0.s8 %v888
    %v890 = vlaneseq
    %v891 = vshrl.u32 %v890, 7
    %v892 = vsub.s32 %v889, %v891
    %v893 = vrot.slane %v885, %v892
    %v895 = vunpack.c.l.s4 1934713408
    %v896 = vunpack.c.0.s8 %v895
    %v897 = vlaneseq
    %v898 = vshrl.u32 %v897, 7
    %v899 = vsub.s32 %v896, %v898
    %v900 = vrot.slane %v886, %v899
    %v901 = vcombine.high %v877, 0.0
    %v902 = vcombine.high %v884, 0.0
    %v903 = vcombine.high %v893, 0.0
    %v904 = vcombine.high %v900, 0.0
    %905 = vst [vmem:[#allocation14] sm:$0x3] %v877
    %906 = vst [vmem:[#allocation14 + $0x2] sm:$0x3] %v901
    %907 = vst [vmem:[#allocation14 + $0x4] sm:$0x3] %v884
    %908 = vst [vmem:[#allocation14 + $0x6] sm:$0x3] %v902
    %909 = vst [vmem:[#allocation14 + $0x8] sm:$0x3] %v893
    %910 = vst [vmem:[#allocation14 + $0xa] sm:$0x3] %v903
    %911 = vst [vmem:[#allocation14 + $0xc] sm:$0x3] %v900
    %912 = vst [vmem:[#allocation14 + $0xe] sm:$0x3] %v904
    // Predicated region
    $region54: #{tpu_custom_call.1} parent=1 // pred_check
      _
    $region55: #{tpu_custom_call.1} parent=1 // pred_check_branch
      %914 = sbr.rel (0) target = $region57
    $region56: #{tpu_custom_call.1} parent=1 // pred_region
      %s916 = ssub.s32 256, 256
      %917 = vsyncadd [#allocation4], %s916
      %s918 = sshll.u32 [#allocation13], 4
      %s919 = int_to_ptr.vmem [resolvable:$true] %s918
      %924 = dma.vmem_to_hbm [thread:$0]  %s919, 256, %s7, [#allocation4], 32, 32, 2
    $region57: #{tpu_custom_call.1} parent=1 // pred_fallthru
      _
    // Predicated region
    $region58: #{tpu_custom_call.1} parent=1 // pred_check
      _
    $region59: #{tpu_custom_call.1} parent=1 // pred_check_branch
      %926 = sbr.rel (0) target = $region61
    $region60: #{tpu_custom_call.1} parent=1 // pred_region
      %s928 = ssub.s32 256, 256
      %929 = vsyncadd [#allocation15], %s928
      %s930 = sshll.u32 [#allocation14], 4
      %s931 = int_to_ptr.vmem [resolvable:$true] %s930
      %936 = dma.vmem_to_hbm [thread:$0]  %s931, 256, %s8, [#allocation15], 32, 32, 2
    $region61: #{tpu_custom_call.1} parent=1 // pred_fallthru
      _
    // Predicated region
    $region62: #{tpu_custom_call.1} parent=1 // pred_check
      _
    $region63: #{tpu_custom_call.1} parent=1 // pred_check_branch
      %938 = sbr.rel (0) target = $region65
    $region64: #{tpu_custom_call.1} parent=1 // pred_region
      %939 = dma.done [#allocation4], 256
    $region65: #{tpu_custom_call.1} parent=1 // pred_fallthru
      _
    // Predicated region
    $region66: #{tpu_custom_call.1} parent=1 // pred_check
      _
    $region67: #{tpu_custom_call.1} parent=1 // pred_check_branch
      %941 = sbr.rel (0) target = $region69
    $region68: #{tpu_custom_call.1} parent=1 // pred_region
      %942 = dma.done [#allocation15], 256
    $region69: #{tpu_custom_call.1} parent=1 // pred_fallthru
      _
    %943 = vsyncpa [#allocation3], 1
    %944 = vsyncpa [#allocation6], 1
    %945 = vsyncpa [#allocation9], 1
    %946 = vsyncpa [#allocation12], 1
    %947 = vsyncpa [#allocation4], 1
    %948 = vsyncpa [#allocation15], 1

</llo_original>
